<compile_context>
chip_gen: v6e
topology: v6e:2x2x1
jax: 0.10.0
libtpu: 0.0.40
codegen_flags: <defaults>
</compile_context>

<pallas_src>
import functools

import jax
import jax.numpy as jnp
from jax.experimental import pallas as pl
from jax.experimental.pallas import tpu as pltpu

# LSNNParameters defaults (norse/myelin), dt = 1e-3
DT = 1e-3
TAU_SYN_INV = 1.0 / 5e-3
TAU_MEM_INV = 1.0 / 1e-2
TAU_ADAPT_INV = 1.0 / 700.0
V_LEAK = 0.0
V_TH = 1.0
V_RESET = 0.0
BETA = 1.8


def lsnn_layer_kernel(xw_ref, w_rec_ref,
                      z_seq_ref, z_f_ref, v_f_ref, i_f_ref, b_f_ref,
                      *, t_chunk, direct_layout):
    c = pl.program_id(1)  # time-chunk index (sequential recurrence axis)

    # initial_state(): all zeros. State refs are output-resident accumulators
    # (constant index_map across the time axis), so init them once per tile.
    # TODO(synk): to support a caller-provided non-zero initial LSNNState, feed
    # it via input_output_aliases instead of zero-init here.
    @pl.when(c == 0)
    def _():
        z_f_ref[...] = jnp.zeros_like(z_f_ref)
        v_f_ref[...] = jnp.zeros_like(v_f_ref)
        i_f_ref[...] = jnp.zeros_like(i_f_ref)
        b_f_ref[...] = jnp.zeros_like(b_f_ref)

    z = z_f_ref[...]
    v = v_f_ref[...]
    i = i_f_ref[...]
    b = b_f_ref[...]
    w_rec = w_rec_ref[...]  # grid-invariant; hoisted load, reused all steps

    spikes = []
    # Fully unrolled inner time loop (t_chunk is small & static) -> all slices
    # below are static (no dynamic lane offsets).
    for s in range(t_chunk):
        # Decays — expression order matches the LSNNCell reference exactly
        # (keeps the f32 validation bit-stable). State math stays f32 (v5e has
        # no native bf16 VPU).
        v_dec = v + DT * TAU_MEM_INV * ((V_LEAK - v) + i)
        i_dec = i + (-DT * TAU_SYN_INV) * i
        b_dec = b + DT * TAU_ADAPT_INV * (V_TH - b)

        # spike (heaviside forward of the surrogate-gradient threshold)
        spike = (v_dec - b_dec) > 0.0
        z_new = jnp.where(spike, 1.0, 0.0).astype(jnp.float32)

        # current jump: precomputed input projection xw[t] = x_t @ W_in^T plus
        # the recurrent term using the *previous* step's spikes z.  W_rec is
        # pre-cast in the wrapper (bf16 recommended for large H); accumulation
        # stays f32 via preferred_element_type.
        i = (i_dec + xw_ref[s].astype(jnp.float32)
             + jnp.dot(z.astype(w_rec.dtype), w_rec,
                       preferred_element_type=jnp.float32))

        # reset + threshold adaptation (BUGFIX: jump = tau_adapt_inv * beta)
        v = jnp.where(spike, V_RESET, v_dec)
        b = jnp.where(spike, b_dec + TAU_ADAPT_INV * BETA, b_dec)
        z = z_new

        if direct_layout:
            # H is a multiple of 128: unmasked lane-dense store, direct [T,B,H].
            z_seq_ref[s] = z_new.astype(z_seq_ref.dtype)
        else:
            spikes.append(z_new)

    if not direct_layout:
        # H < 128: one full-block (t_chunk*H lanes) store per chunk instead of
        # t_chunk masked sub-128-lane stores.
        z_seq_ref[0] = jnp.concatenate(spikes, axis=-1).astype(z_seq_ref.dtype)

    # carry state to the next time chunk
    z_f_ref[...] = z
    v_f_ref[...] = v
    i_f_ref[...] = i
    b_f_ref[...] = b


@functools.partial(
    jax.jit,
    static_argnames=("t_chunk", "batch_tile", "spike_dtype", "io_dtype",
                     "matmul_dtype", "w_rec_is_transposed"))
def lsnn_layer(x, w_in, w_rec, *, t_chunk=None, batch_tile=None,
               spike_dtype=jnp.bfloat16, io_dtype=jnp.float32,
               matmul_dtype=jnp.float32, w_rec_is_transposed=False):
    """x: [T, B, N_in]; w_in: [H, N_in]; w_rec: [H, H] (torch F.linear convention).

    Returns (z_seq [T,B,H], z [B,H], v [B,H], i [B,H], b [B,H]).

    Production settings: spike_dtype=bf16 (exact, default), io_dtype=bf16 for
    the xw stream, matmul_dtype=bf16 for W_rec (MXU-native; ~1e-3 rel rounding
    on the recurrent term), and pass W_rec already transposed
    (w_rec_is_transposed=True) to skip the per-call HxH transpose.
    """
    T, B, N_in = x.shape
    H = w_in.shape[0]

    if t_chunk is None:
        # amortize per-grid-step overhead; bounded by VMEM (2x xw + 2x spike
        # blocks) and unrolled vreg pressure.
        t_chunk = next(tc for tc in (16, 8, 4, 2, 1) if T % tc == 0)
    if batch_tile is None:
        # Split the batch when it is large enough so the "parallel" axis has
        # extent > 1 (v7x megacore), while keeping the MXU M dimension big.
        if B >= 16 and B % max(8, B // 2) == 0:
            batch_tile = max(8, B // 2)
        else:
            batch_tile = B
    assert T % t_chunk == 0, "T must be a multiple of t_chunk"
    assert B % batch_tile == 0, "B must be a multiple of batch_tile"
    if batch_tile != B:
        assert batch_tile % 8 == 0, "partial batch tiles must be multiples of 8"
    nb = B // batch_tile
    nc = T // t_chunk
    direct_layout = (H % 128 == 0)

    # Hoisted input projection: one big matmul with M = T*B rows instead of T
    # tiny (M = B) matmuls inside the serial recurrence.
    # TODO(synk): when N_in << H (or xw HBM traffic dominates), fuse this into
    # the kernel by streaming x (t_chunk, batch_tile, N_in) and keeping W_in
    # resident; the chunk matmul is state-independent so it is off the serial
    # chain.
    xw = jnp.einsum("tbn,hn->tbh", x, w_in).astype(io_dtype)   # [T, B, H]

    w_rec_t = w_rec if w_rec_is_transposed else jnp.transpose(w_rec)
    w_rec_t = w_rec_t.astype(matmul_dtype)                     # cast once, not per step

    if direct_layout:
        # Spikes written directly in [T, B, H]; no post-kernel transpose.
        z_seq_shape = jax.ShapeDtypeStruct((T, B, H), spike_dtype)
        z_seq_spec = pl.BlockSpec((t_chunk, batch_tile, H), lambda bi, c: (c, bi, 0))
    else:
        # H < 128: lane-dense slab (last dim t_chunk*H), reshaped in wrapper.
        z_seq_shape = jax.ShapeDtypeStruct((nc, B, t_chunk * H), spike_dtype)
        z_seq_spec = pl.BlockSpec((1, batch_tile, t_chunk * H), lambda bi, c: (c, bi, 0))

    state_shape = jax.ShapeDtypeStruct((B, H), jnp.float32)
    state_spec = pl.BlockSpec((batch_tile, H), lambda bi, c: (bi, 0))

    # VMEM budget from actual block sizes (double-buffered streams, W_rec,
    # 4 resident state blocks) + headroom, instead of the default scoped limit.
    itm = lambda dt: jnp.dtype(dt).itemsize
    blk_bytes = (2 * t_chunk * batch_tile * H * (itm(io_dtype) + itm(spike_dtype))
                 + 2 * H * H * itm(matmul_dtype)
                 + 2 * 4 * batch_tile * H * 4)
    vmem_limit = int(min(max(blk_bytes + (16 << 20), 32 << 20), 128 << 20))

    grid_spec = pltpu.PrefetchScalarGridSpec(
        num_scalar_prefetch=0,
        grid=(nb, nc),   # (parallel batch tiles, sequential time chunks)
        in_specs=[
            pl.BlockSpec((t_chunk, batch_tile, H), lambda bi, c: (c, bi, 0)),
            # TODO(synk): on v7x with large H, single-buffer this grid-invariant
            # block (pipeline_mode=pl.Buffered(1)) to halve its VMEM footprint.
            pl.BlockSpec((H, H), lambda bi, c: (0, 0)),
        ],
        out_specs=[z_seq_spec, state_spec, state_spec, state_spec, state_spec],
    )

    kernel = functools.partial(lsnn_layer_kernel, t_chunk=t_chunk,
                               direct_layout=direct_layout)

    z_out, z_f, v_f, i_f, b_f = pl.pallas_call(
        kernel,
        out_shape=(z_seq_shape, state_shape, state_shape, state_shape, state_shape),
        grid_spec=grid_spec,
        compiler_params=pltpu.CompilerParams(
            dimension_semantics=("parallel", "arbitrary"),
            vmem_limit_bytes=vmem_limit),
    )(xw, w_rec_t)

    if direct_layout:
        z_seq = z_out
    else:
        z_seq = (z_out.reshape(nc, B, t_chunk, H)
                 .transpose(0, 2, 1, 3)
                 .reshape(T, B, H))
    return z_seq, z_f, v_f, i_f, b_f


def lsnn_layer_ref(x, w_in, w_rec):
    """Pure-JAX reference of the time loop (spec-faithful, for correctness)."""
    T, B, _ = x.shape
    H = w_in.shape[0]
    z = jnp.zeros((B, H), jnp.float32)
    v = jnp.zeros((B, H), jnp.float32)
    i = jnp.zeros((B, H), jnp.float32)
    b = jnp.zeros((B, H), jnp.float32)

    def step(carry, x_t):
        z, v, i, b = carry
        v_dec = v + DT * TAU_MEM_INV * ((V_LEAK - v) + i)
        i_dec = i + (-DT * TAU_SYN_INV) * i
        b_dec = b + DT * TAU_ADAPT_INV * (V_TH - b)
        z_new = (v_dec - b_dec > 0.0).astype(jnp.float32)
        v_new = (1.0 - z_new) * v_dec + z_new * V_RESET
        i_new = i_dec + x_t @ w_in.T + z @ w_rec.T
        b_new = b_dec + z_new * (TAU_ADAPT_INV * BETA)
        return (z_new, v_new, i_new, b_new), z_new

    (z, v, i, b), zs = jax.lax.scan(step, (z, v, i, b), x)
    return zs, z, v, i, b


if __name__ == "__main__":
    key = jax.random.PRNGKey(0)

    def run_case(T, B, N_IN, H, t_chunk):
        kx, kw_in, kw_rec = jax.random.split(jax.random.fold_in(key, H), 3)
        # Deterministic synthetic parameters (same shapes / scale as LSNNCell
        # init: randn(hidden, input) * sqrt(2/hidden)).
        x = jax.random.normal(kx, (T, B, N_IN), dtype=jnp.float32) * 2.0
        w_in = jax.random.normal(kw_in, (H, N_IN), dtype=jnp.float32) * jnp.sqrt(2.0 / H)
        w_rec = jax.random.normal(kw_rec, (H, H), dtype=jnp.float32) * jnp.sqrt(2.0 / H)

        # t_chunk=4 -> 2 time chunks: exercises the cross-chunk state carry.
        z_seq, z_f, v_f, i_f, b_f = lsnn_layer(x, w_in, w_rec, t_chunk=t_chunk)
        jax.block_until_ready((z_seq, z_f, v_f, i_f, b_f))

        # Sanity check against the pure-JAX reference (spikes are exact even in
        # bf16 since they are {0,1}).
        z_seq_r, z_r, v_r, i_r, b_r = lsnn_layer_ref(x, w_in, w_rec)
        assert jnp.allclose(z_seq.astype(jnp.float32), z_seq_r, atol=1e-5), "z_seq"
        assert jnp.allclose(z_f, z_r, atol=1e-5), "z_f"
        assert jnp.allclose(v_f, v_r, atol=1e-4), "v_f"
        assert jnp.allclose(i_f, i_r, atol=1e-4), "i_f"
        assert jnp.allclose(b_f, b_r, atol=1e-4), "b_f"

    # H < 128 -> slab layout with one lane-dense concatenated store per chunk.
    run_case(T=8, B=2, N_IN=16, H=32, t_chunk=4)
    # H % 128 == 0 -> direct [T, B, H] spike layout (no post-kernel transpose).
    run_case(T=8, B=2, N_IN=16, H=128, t_chunk=4)

    print("KERNEL_OK")
</pallas_src>

<mosaic_0001>
module attributes {stable_mosaic.version = 11 : i64} {
  func.func @lsnn_layer_kernel(%arg0: i32, %arg1: i32, %arg2: memref<4x2x32xf32, #tpu.memory_space<vmem>>, %arg3: memref<32x32xf32, #tpu.memory_space<vmem>>, %arg4: memref<1x2x128xbf16, #tpu.memory_space<vmem>>, %arg5: memref<2x32xf32, #tpu.memory_space<vmem>>, %arg6: memref<2x32xf32, #tpu.memory_space<vmem>>, %arg7: memref<2x32xf32, #tpu.memory_space<vmem>>, %arg8: memref<2x32xf32, #tpu.memory_space<vmem>>) attributes {dimension_semantics = [#tpu.dimension_semantics<parallel>, #tpu.dimension_semantics<arbitrary>], iteration_bounds = array<i64: 1, 2>, scalar_prefetch = 0 : i64, scratch_operands = 0 : i64, tpu.core_type = #tpu.core_type<tc>, window_params = [{transform_indices = @transform_0, window_bounds = array<i64: 4, 2, 32>}, {pipeline_mode = #tpu.pipeline_mode<synchronous>, transform_indices = @transform_1, window_bounds = array<i64: 32, 32>}, {transform_indices = @transform_2, window_bounds = array<i64: 1, 2, 128>}, {transform_indices = @transform_3, window_bounds = array<i64: 2, 32>}, {transform_indices = @transform_4, window_bounds = array<i64: 2, 32>}, {transform_indices = @transform_5, window_bounds = array<i64: 2, 32>}, {transform_indices = @transform_6, window_bounds = array<i64: 2, 32>}]} {
    %c0_i32 = arith.constant 0 : i32
    %0 = arith.cmpi eq, %arg1, %c0_i32 : i32
    %1 = arith.extui %0 : i1 to i32
    %c0_i32_0 = arith.constant 0 : i32
    %2 = arith.cmpi ne, %1, %c0_i32_0 : i32
    scf.if %2 {
      %cst_73 = arith.constant 0.000000e+00 : f32
      %137 = vector.broadcast %cst_73 : f32 to vector<2x32xf32>
      %c0_74 = arith.constant 0 : index
      %c0_75 = arith.constant 0 : index
      %138 = vector.load %arg5[%c0_74, %c0_75] : memref<2x32xf32, #tpu.memory_space<vmem>>, vector<2x32xf32>
      tpu.vector_store %arg5[%c0_74, %c0_75], %137 {strides = array<i32>} : memref<2x32xf32, #tpu.memory_space<vmem>>, vector<2x32xf32>,
      %cst_76 = arith.constant 0.000000e+00 : f32
      %139 = vector.broadcast %cst_76 : f32 to vector<2x32xf32>
      %c0_77 = arith.constant 0 : index
      %c0_78 = arith.constant 0 : index
      %140 = vector.load %arg6[%c0_77, %c0_78] : memref<2x32xf32, #tpu.memory_space<vmem>>, vector<2x32xf32>
      tpu.vector_store %arg6[%c0_77, %c0_78], %139 {strides = array<i32>} : memref<2x32xf32, #tpu.memory_space<vmem>>, vector<2x32xf32>,
      %cst_79 = arith.constant 0.000000e+00 : f32
      %141 = vector.broadcast %cst_79 : f32 to vector<2x32xf32>
      %c0_80 = arith.constant 0 : index
      %c0_81 = arith.constant 0 : index
      %142 = vector.load %arg7[%c0_80, %c0_81] : memref<2x32xf32, #tpu.memory_space<vmem>>, vector<2x32xf32>
      tpu.vector_store %arg7[%c0_80, %c0_81], %141 {strides = array<i32>} : memref<2x32xf32, #tpu.memory_space<vmem>>, vector<2x32xf32>,
      %cst_82 = arith.constant 0.000000e+00 : f32
      %143 = vector.broadcast %cst_82 : f32 to vector<2x32xf32>
      %c0_83 = arith.constant 0 : index
      %c0_84 = arith.constant 0 : index
      %144 = vector.load %arg8[%c0_83, %c0_84] : memref<2x32xf32, #tpu.memory_space<vmem>>, vector<2x32xf32>
      tpu.vector_store %arg8[%c0_83, %c0_84], %143 {strides = array<i32>} : memref<2x32xf32, #tpu.memory_space<vmem>>, vector<2x32xf32>,
    } else {
    }
    %c0 = arith.constant 0 : index
    %c0_1 = arith.constant 0 : index
    %3 = vector.load %arg5[%c0, %c0_1] : memref<2x32xf32, #tpu.memory_space<vmem>>, vector<2x32xf32>
    %c0_2 = arith.constant 0 : index
    %c0_3 = arith.constant 0 : index
    %4 = vector.load %arg6[%c0_2, %c0_3] : memref<2x32xf32, #tpu.memory_space<vmem>>, vector<2x32xf32>
    %c0_4 = arith.constant 0 : index
    %c0_5 = arith.constant 0 : index
    %5 = vector.load %arg7[%c0_4, %c0_5] : memref<2x32xf32, #tpu.memory_space<vmem>>, vector<2x32xf32>
    %c0_6 = arith.constant 0 : index
    %c0_7 = arith.constant 0 : index
    %6 = vector.load %arg8[%c0_6, %c0_7] : memref<2x32xf32, #tpu.memory_space<vmem>>, vector<2x32xf32>
    %c0_8 = arith.constant 0 : index
    %c0_9 = arith.constant 0 : index
    %7 = vector.load %arg3[%c0_8, %c0_9] : memref<32x32xf32, #tpu.memory_space<vmem>>, vector<32x32xf32>
    %cst = arith.constant 0.000000e+00 : f32
    %8 = vector.broadcast %cst : f32 to vector<2x32xf32>
    %9 = arith.subf %8, %4 : vector<2x32xf32>
    %10 = arith.addf %9, %5 : vector<2x32xf32>
    %cst_10 = arith.constant 1.000000e-01 : f32
    %11 = vector.broadcast %cst_10 : f32 to vector<2x32xf32>
    %12 = arith.mulf %11, %10 : vector<2x32xf32>
    %13 = arith.addf %4, %12 : vector<2x32xf32>
    %cst_11 = arith.constant -2.000000e-01 : f32
    %14 = vector.broadcast %cst_11 : f32 to vector<2x32xf32>
    %15 = arith.mulf %14, %5 : vector<2x32xf32>
    %16 = arith.addf %5, %15 : vector<2x32xf32>
    %cst_12 = arith.constant 1.000000e+00 : f32
    %17 = vector.broadcast %cst_12 : f32 to vector<2x32xf32>
    %18 = arith.subf %17, %6 : vector<2x32xf32>
    %cst_13 = arith.constant 1.42857141E-6 : f32
    %19 = vector.broadcast %cst_13 : f32 to vector<2x32xf32>
    %20 = arith.mulf %19, %18 : vector<2x32xf32>
    %21 = arith.addf %6, %20 : vector<2x32xf32>
    %22 = arith.subf %13, %21 : vector<2x32xf32>
    %cst_14 = arith.constant 0.000000e+00 : f32
    %23 = vector.broadcast %cst_14 : f32 to vector<2x32xf32>
    %24 = arith.cmpf ogt, %22, %23 : vector<2x32xf32>
    %cst_15 = arith.constant 1.000000e+00 : f32
    %cst_16 = arith.constant 0.000000e+00 : f32
    %25 = vector.broadcast %cst_15 : f32 to vector<2x32xf32>
    %26 = vector.broadcast %cst_16 : f32 to vector<2x32xf32>
    %27 = arith.select %24, %25, %26 : vector<2x32xi1>, vector<2x32xf32>
    %c0_17 = arith.constant 0 : index
    %c0_18 = arith.constant 0 : index
    %c0_19 = arith.constant 0 : index
    %28 = vector.load %arg2[%c0_17, %c0_18, %c0_19] : memref<4x2x32xf32, #tpu.memory_space<vmem>>, vector<1x2x32xf32>
    %29 = vector.shape_cast %28 : vector<1x2x32xf32> to vector<2x32xf32>
    %30 = arith.addf %16, %29 : vector<2x32xf32>
    %cst_20 = arith.constant dense<0.000000e+00> : vector<2x32xf32>
    %31 = tpu.matmul %3, %7, %cst_20 {dimension_numbers = #tpu.dot_dimension_numbers<[1], [0], [0], [1], [0, 0, 1, 1], [], []>} : vector<2x32xf32>, vector<32x32xf32>, vector<2x32xf32> -> vector<2x32xf32>
    %32 = arith.addf %30, %31 : vector<2x32xf32>
    %cst_21 = arith.constant 0.000000e+00 : f32
    %33 = vector.broadcast %cst_21 : f32 to vector<2x32xf32>
    %34 = arith.select %24, %33, %13 : vector<2x32xi1>, vector<2x32xf32>
    %cst_22 = arith.constant 0.00257142866 : f32
    %35 = vector.broadcast %cst_22 : f32 to vector<2x32xf32>
    %36 = arith.addf %21, %35 : vector<2x32xf32>
    %37 = arith.select %24, %36, %21 : vector<2x32xi1>, vector<2x32xf32>
    %cst_23 = arith.constant 0.000000e+00 : f32
    %38 = vector.broadcast %cst_23 : f32 to vector<2x32xf32>
    %39 = arith.subf %38, %34 : vector<2x32xf32>
    %40 = arith.addf %39, %32 : vector<2x32xf32>
    %cst_24 = arith.constant 1.000000e-01 : f32
    %41 = vector.broadcast %cst_24 : f32 to vector<2x32xf32>
    %42 = arith.mulf %41, %40 : vector<2x32xf32>
    %43 = arith.addf %34, %42 : vector<2x32xf32>
    %cst_25 = arith.constant -2.000000e-01 : f32
    %44 = vector.broadcast %cst_25 : f32 to vector<2x32xf32>
    %45 = arith.mulf %44, %32 : vector<2x32xf32>
    %46 = arith.addf %32, %45 : vector<2x32xf32>
    %cst_26 = arith.constant 1.000000e+00 : f32
    %47 = vector.broadcast %cst_26 : f32 to vector<2x32xf32>
    %48 = arith.subf %47, %37 : vector<2x32xf32>
    %cst_27 = arith.constant 1.42857141E-6 : f32
    %49 = vector.broadcast %cst_27 : f32 to vector<2x32xf32>
    %50 = arith.mulf %49, %48 : vector<2x32xf32>
    %51 = arith.addf %37, %50 : vector<2x32xf32>
    %52 = arith.subf %43, %51 : vector<2x32xf32>
    %cst_28 = arith.constant 0.000000e+00 : f32
    %53 = vector.broadcast %cst_28 : f32 to vector<2x32xf32>
    %54 = arith.cmpf ogt, %52, %53 : vector<2x32xf32>
    %cst_29 = arith.constant 1.000000e+00 : f32
    %cst_30 = arith.constant 0.000000e+00 : f32
    %55 = vector.broadcast %cst_29 : f32 to vector<2x32xf32>
    %56 = vector.broadcast %cst_30 : f32 to vector<2x32xf32>
    %57 = arith.select %54, %55, %56 : vector<2x32xi1>, vector<2x32xf32>
    %c1 = arith.constant 1 : index
    %c0_31 = arith.constant 0 : index
    %c0_32 = arith.constant 0 : index
    %58 = vector.load %arg2[%c1, %c0_31, %c0_32] : memref<4x2x32xf32, #tpu.memory_space<vmem>>, vector<1x2x32xf32>
    %59 = vector.shape_cast %58 : vector<1x2x32xf32> to vector<2x32xf32>
    %60 = arith.addf %46, %59 : vector<2x32xf32>
    %cst_33 = arith.constant dense<0.000000e+00> : vector<2x32xf32>
    %61 = tpu.matmul %27, %7, %cst_33 {dimension_numbers = #tpu.dot_dimension_numbers<[1], [0], [0], [1], [0, 0, 1, 1], [], []>} : vector<2x32xf32>, vector<32x32xf32>, vector<2x32xf32> -> vector<2x32xf32>
    %62 = arith.addf %60, %61 : vector<2x32xf32>
    %cst_34 = arith.constant 0.000000e+00 : f32
    %63 = vector.broadcast %cst_34 : f32 to vector<2x32xf32>
    %64 = arith.select %54, %63, %43 : vector<2x32xi1>, vector<2x32xf32>
    %cst_35 = arith.constant 0.00257142866 : f32
    %65 = vector.broadcast %cst_35 : f32 to vector<2x32xf32>
    %66 = arith.addf %51, %65 : vector<2x32xf32>
    %67 = arith.select %54, %66, %51 : vector<2x32xi1>, vector<2x32xf32>
    %cst_36 = arith.constant 0.000000e+00 : f32
    %68 = vector.broadcast %cst_36 : f32 to vector<2x32xf32>
    %69 = arith.subf %68, %64 : vector<2x32xf32>
    %70 = arith.addf %69, %62 : vector<2x32xf32>
    %cst_37 = arith.constant 1.000000e-01 : f32
    %71 = vector.broadcast %cst_37 : f32 to vector<2x32xf32>
    %72 = arith.mulf %71, %70 : vector<2x32xf32>
    %73 = arith.addf %64, %72 : vector<2x32xf32>
    %cst_38 = arith.constant -2.000000e-01 : f32
    %74 = vector.broadcast %cst_38 : f32 to vector<2x32xf32>
    %75 = arith.mulf %74, %62 : vector<2x32xf32>
    %76 = arith.addf %62, %75 : vector<2x32xf32>
    %cst_39 = arith.constant 1.000000e+00 : f32
    %77 = vector.broadcast %cst_39 : f32 to vector<2x32xf32>
    %78 = arith.subf %77, %67 : vector<2x32xf32>
    %cst_40 = arith.constant 1.42857141E-6 : f32
    %79 = vector.broadcast %cst_40 : f32 to vector<2x32xf32>
    %80 = arith.mulf %79, %78 : vector<2x32xf32>
    %81 = arith.addf %67, %80 : vector<2x32xf32>
    %82 = arith.subf %73, %81 : vector<2x32xf32>
    %cst_41 = arith.constant 0.000000e+00 : f32
    %83 = vector.broadcast %cst_41 : f32 to vector<2x32xf32>
    %84 = arith.cmpf ogt, %82, %83 : vector<2x32xf32>
    %cst_42 = arith.constant 1.000000e+00 : f32
    %cst_43 = arith.constant 0.000000e+00 : f32
    %85 = vector.broadcast %cst_42 : f32 to vector<2x32xf32>
    %86 = vector.broadcast %cst_43 : f32 to vector<2x32xf32>
    %87 = arith.select %84, %85, %86 : vector<2x32xi1>, vector<2x32xf32>
    %c2 = arith.constant 2 : index
    %c0_44 = arith.constant 0 : index
    %c0_45 = arith.constant 0 : index
    %88 = vector.load %arg2[%c2, %c0_44, %c0_45] : memref<4x2x32xf32, #tpu.memory_space<vmem>>, vector<1x2x32xf32>
    %89 = vector.shape_cast %88 : vector<1x2x32xf32> to vector<2x32xf32>
    %90 = arith.addf %76, %89 : vector<2x32xf32>
    %cst_46 = arith.constant dense<0.000000e+00> : vector<2x32xf32>
    %91 = tpu.matmul %57, %7, %cst_46 {dimension_numbers = #tpu.dot_dimension_numbers<[1], [0], [0], [1], [0, 0, 1, 1], [], []>} : vector<2x32xf32>, vector<32x32xf32>, vector<2x32xf32> -> vector<2x32xf32>
    %92 = arith.addf %90, %91 : vector<2x32xf32>
    %cst_47 = arith.constant 0.000000e+00 : f32
    %93 = vector.broadcast %cst_47 : f32 to vector<2x32xf32>
    %94 = arith.select %84, %93, %73 : vector<2x32xi1>, vector<2x32xf32>
    %cst_48 = arith.constant 0.00257142866 : f32
    %95 = vector.broadcast %cst_48 : f32 to vector<2x32xf32>
    %96 = arith.addf %81, %95 : vector<2x32xf32>
    %97 = arith.select %84, %96, %81 : vector<2x32xi1>, vector<2x32xf32>
    %cst_49 = arith.constant 0.000000e+00 : f32
    %98 = vector.broadcast %cst_49 : f32 to vector<2x32xf32>
    %99 = arith.subf %98, %94 : vector<2x32xf32>
    %100 = arith.addf %99, %92 : vector<2x32xf32>
    %cst_50 = arith.constant 1.000000e-01 : f32
    %101 = vector.broadcast %cst_50 : f32 to vector<2x32xf32>
    %102 = arith.mulf %101, %100 : vector<2x32xf32>
    %103 = arith.addf %94, %102 : vector<2x32xf32>
    %cst_51 = arith.constant -2.000000e-01 : f32
    %104 = vector.broadcast %cst_51 : f32 to vector<2x32xf32>
    %105 = arith.mulf %104, %92 : vector<2x32xf32>
    %106 = arith.addf %92, %105 : vector<2x32xf32>
    %cst_52 = arith.constant 1.000000e+00 : f32
    %107 = vector.broadcast %cst_52 : f32 to vector<2x32xf32>
    %108 = arith.subf %107, %97 : vector<2x32xf32>
    %cst_53 = arith.constant 1.42857141E-6 : f32
    %109 = vector.broadcast %cst_53 : f32 to vector<2x32xf32>
    %110 = arith.mulf %109, %108 : vector<2x32xf32>
    %111 = arith.addf %97, %110 : vector<2x32xf32>
    %112 = arith.subf %103, %111 : vector<2x32xf32>
    %cst_54 = arith.constant 0.000000e+00 : f32
    %113 = vector.broadcast %cst_54 : f32 to vector<2x32xf32>
    %114 = arith.cmpf ogt, %112, %113 : vector<2x32xf32>
    %cst_55 = arith.constant 1.000000e+00 : f32
    %cst_56 = arith.constant 0.000000e+00 : f32
    %115 = vector.broadcast %cst_55 : f32 to vector<2x32xf32>
    %116 = vector.broadcast %cst_56 : f32 to vector<2x32xf32>
    %117 = arith.select %114, %115, %116 : vector<2x32xi1>, vector<2x32xf32>
    %c3 = arith.constant 3 : index
    %c0_57 = arith.constant 0 : index
    %c0_58 = arith.constant 0 : index
    %118 = vector.load %arg2[%c3, %c0_57, %c0_58] : memref<4x2x32xf32, #tpu.memory_space<vmem>>, vector<1x2x32xf32>
    %119 = vector.shape_cast %118 : vector<1x2x32xf32> to vector<2x32xf32>
    %120 = arith.addf %106, %119 : vector<2x32xf32>
    %cst_59 = arith.constant dense<0.000000e+00> : vector<2x32xf32>
    %121 = tpu.matmul %87, %7, %cst_59 {dimension_numbers = #tpu.dot_dimension_numbers<[1], [0], [0], [1], [0, 0, 1, 1], [], []>} : vector<2x32xf32>, vector<32x32xf32>, vector<2x32xf32> -> vector<2x32xf32>
    %122 = arith.addf %120, %121 : vector<2x32xf32>
    %cst_60 = arith.constant 0.000000e+00 : f32
    %123 = vector.broadcast %cst_60 : f32 to vector<2x32xf32>
    %124 = arith.select %114, %123, %103 : vector<2x32xi1>, vector<2x32xf32>
    %cst_61 = arith.constant 0.00257142866 : f32
    %125 = vector.broadcast %cst_61 : f32 to vector<2x32xf32>
    %126 = arith.addf %111, %125 : vector<2x32xf32>
    %127 = arith.select %114, %126, %111 : vector<2x32xi1>, vector<2x32xf32>
    %128 = tpu.concatenate %27, %57, %87, %117 in 1 : vector<2x32xf32>, vector<2x32xf32>, vector<2x32xf32>, vector<2x32xf32> -> vector<2x128xf32>
    %129 = arith.truncf %128 : vector<2x128xf32> to vector<2x128xbf16>
    %c0_62 = arith.constant 0 : index
    %c0_63 = arith.constant 0 : index
    %c0_64 = arith.constant 0 : index
    %130 = vector.load %arg4[%c0_62, %c0_63, %c0_64] : memref<1x2x128xbf16, #tpu.memory_space<vmem>>, vector<1x2x128xbf16>
    %131 = vector.shape_cast %130 : vector<1x2x128xbf16> to vector<2x128xbf16>
    %132 = vector.shape_cast %129 : vector<2x128xbf16> to vector<1x2x128xbf16>
    tpu.vector_store %arg4[%c0_62, %c0_63, %c0_64], %132 {strides = array<i32>} : memref<1x2x128xbf16, #tpu.memory_space<vmem>>, vector<1x2x128xbf16>,
    %c0_65 = arith.constant 0 : index
    %c0_66 = arith.constant 0 : index
    %133 = vector.load %arg5[%c0_65, %c0_66] : memref<2x32xf32, #tpu.memory_space<vmem>>, vector<2x32xf32>
    tpu.vector_store %arg5[%c0_65, %c0_66], %117 {strides = array<i32>} : memref<2x32xf32, #tpu.memory_space<vmem>>, vector<2x32xf32>,
    %c0_67 = arith.constant 0 : index
    %c0_68 = arith.constant 0 : index
    %134 = vector.load %arg6[%c0_67, %c0_68] : memref<2x32xf32, #tpu.memory_space<vmem>>, vector<2x32xf32>
    tpu.vector_store %arg6[%c0_67, %c0_68], %124 {strides = array<i32>} : memref<2x32xf32, #tpu.memory_space<vmem>>, vector<2x32xf32>,
    %c0_69 = arith.constant 0 : index
    %c0_70 = arith.constant 0 : index
    %135 = vector.load %arg7[%c0_69, %c0_70] : memref<2x32xf32, #tpu.memory_space<vmem>>, vector<2x32xf32>
    tpu.vector_store %arg7[%c0_69, %c0_70], %122 {strides = array<i32>} : memref<2x32xf32, #tpu.memory_space<vmem>>, vector<2x32xf32>,
    %c0_71 = arith.constant 0 : index
    %c0_72 = arith.constant 0 : index
    %136 = vector.load %arg8[%c0_71, %c0_72] : memref<2x32xf32, #tpu.memory_space<vmem>>, vector<2x32xf32>
    tpu.vector_store %arg8[%c0_71, %c0_72], %127 {strides = array<i32>} : memref<2x32xf32, #tpu.memory_space<vmem>>, vector<2x32xf32>,
    return
  }
  func.func @transform_0(%arg0: i32, %arg1: i32) -> (i32, i32, i32) {
    %c0_i32 = arith.constant 0 : i32
    %c0_i32_0 = arith.constant 0 : i32
    return %arg1, %arg0, %c0_i32 : i32, i32, i32
  }
  func.func @transform_1(%arg0: i32, %arg1: i32) -> (i32, i32) {
    %c0_i32 = arith.constant 0 : i32
    %c0_i32_0 = arith.constant 0 : i32
    %c0_i32_1 = arith.constant 0 : i32
    return %c0_i32, %c0_i32_0 : i32, i32
  }
  func.func @transform_2(%arg0: i32, %arg1: i32) -> (i32, i32, i32) {
    %c0_i32 = arith.constant 0 : i32
    %c0_i32_0 = arith.constant 0 : i32
    return %arg1, %arg0, %c0_i32 : i32, i32, i32
  }
  func.func @transform_3(%arg0: i32, %arg1: i32) -> (i32, i32) {
    %c0_i32 = arith.constant 0 : i32
    %c0_i32_0 = arith.constant 0 : i32
    return %arg0, %c0_i32 : i32, i32
  }
  func.func @transform_4(%arg0: i32, %arg1: i32) -> (i32, i32) {
    %c0_i32 = arith.constant 0 : i32
    %c0_i32_0 = arith.constant 0 : i32
    return %arg0, %c0_i32 : i32, i32
  }
  func.func @transform_5(%arg0: i32, %arg1: i32) -> (i32, i32) {
    %c0_i32 = arith.constant 0 : i32
    %c0_i32_0 = arith.constant 0 : i32
    return %arg0, %c0_i32 : i32, i32
  }
  func.func @transform_6(%arg0: i32, %arg1: i32) -> (i32, i32) {
    %c0_i32 = arith.constant 0 : i32
    %c0_i32_0 = arith.constant 0 : i32
    return %arg0, %c0_i32 : i32, i32
  }
}

</mosaic_0001>

<llo_original>
// kernel: lsnn_layer.1
$region0: #{lsnn_layer.1}
  #allocation0 [shape = 'u32[]', space=smem, size = 0x4, offset = 0x4, fixed_abs, tag = 'smem constant byte address 0x4 - core index']
  #allocation1 [shape = 'u32[144,128]{1,0:T(1,128)}', space=vmem, size = 0x12000, scoped, tag = 'internal scratch']
  %s0 = inlined_call_operand.vmem [shape: f32[8,2,32], index: 0, kind: input, shape index: {}]
  %s1 = inlined_call_operand.vmem [shape: f32[32,32], index: 1, kind: input, shape index: {}]
  %s2 = inlined_call_operand.vmem [shape: bf16[2,2,128], index: 2, kind: output, shape index: {0}]
  %s3 = inlined_call_operand.hbm [shape: f32[2,32], index: 3, kind: output, shape index: {1}]
  %s4 = inlined_call_operand.hbm [shape: f32[2,32], index: 4, kind: output, shape index: {2}]
  %s5 = inlined_call_operand.hbm [shape: f32[2,32], index: 5, kind: output, shape index: {3}]
  %s6 = inlined_call_operand.hbm [shape: f32[2,32], index: 6, kind: output, shape index: {4}]
  %7 = xla_tuple %s2, %s3, %s4, %s5, %s6
  %s8 = sld [smem:[#allocation0]]
  $region77: #{lsnn_layer.1} parent=0
    _
  %s10 = ssub.s32 1, %s8
  %s11 = scalar_select 0, %s10, %s8
  $region1: #{lsnn_layer.1} parent=0
    #allocation2 [shape = 'u8[1024]{0}', space=vmem, size = 0x400, scoped, tag = 'output window, operand 1, single buffered']
    #allocation3 [shape = 's32[2]{0}', space=sflag, size = 0x8, scoped, tag = 'scoped memory for lsnn_layer.1']
    #allocation4 [shape = 'u8[1024]{0}', space=vmem, size = 0x400, scoped, tag = 'output window, operand 2, single buffered']
    #allocation5 [shape = 's32[1]{0}', space=sflag, size = 0x4, scoped, tag = 'scoped memory for lsnn_layer.1']
    #allocation6 [shape = 'u8[1024]{0}', space=vmem, size = 0x400, scoped, tag = 'output window, operand 3, single buffered']
    #allocation7 [shape = 'u8[1024]{0}', space=vmem, size = 0x400, scoped, tag = 'output window, operand 4, single buffered']
    #allocation8 [shape = 's32[1]{0}', space=sflag, size = 0x4, scoped, tag = 'scoped memory for lsnn_layer.1']
    %12 = vsyncpa [#allocation3], 0
    %13 = vsyncpa [#allocation5], 0
    %14 = vsyncpa [#allocation8], 0
    loop: start=0, step=1, limit=4
    $region2: #{lsnn_layer.1} parent=1 // loop_pre_header
      _
    $region3: #{lsnn_layer.1} parent=1 // loop_header
      %s16 = sphi 0, %s20
      %p17 = scmp.ge.s32.totalorder %s16, 4
      %s23 = sphi 0, %s35
      %s24 = sphi 0, %s31
      %s25 = sphi 0, %s23
      %s26 = sphi 0, %s24
      %s27 = sphi 0, %s25
      %s28 = sphi 0, %s26
      %s40 = sphi 0, %s42
      %s43 = sphi 0, %s40
      %s44 = sphi 0, %s43
      %s60 = sphi 0, %s44
      %s64 = sphi 0, %s64
      %s66 = sphi 0, %s64
      %s67 = sphi 0, %s66
      %s81 = sphi 0, %s67
      %s89 = sphi 0, %s91
      %s92 = sphi 0, %s89
      %s93 = sphi 0, %s92
      %s109 = sphi 0, %s93
      %s115 = sphi 0, %s117
      %s118 = sphi 0, %s115
      %s119 = sphi 0, %s118
      %s135 = sphi 0, %s119
      %s141 = sphi 0, %s143
      %s144 = sphi 0, %s141
      %s145 = sphi 0, %s144
      %s161 = sphi 0, %s145
      %s167 = sphi 0, %s169
      %s170 = sphi 0, %s167
      %s171 = sphi 0, %s170
      %s187 = sphi 0, %s171
      %s193 = sphi 0, %s195
      %s196 = sphi 0, %s193
      %s197 = sphi 0, %s196
      %s213 = sphi 0, %s197
    $region4: #{lsnn_layer.1} parent=1 // loop_header_branch
      %19 = sbr.rel (%p17) target = $region8
    $region5: #{lsnn_layer.1} parent=1 // loop_body
      %s21 = ssub.s32 %s16, 1
      %s22 = ssub.s32 %s16, 2
      %s29 = sadd.s32 1, %s24
      %p30 = scmp.ge.s32.totalorder %s29, 2
      %s31 = scalar_select %p30, 0, %s29
      %s32 = sadd.s32 1, %s23
      %s33 = scalar_select %p30, %s32, %s23
      %p34 = scmp.ge.s32.totalorder %s33, 1
      %s35 = scalar_select %p34, 0, %s33
      %s36 = ssub.s32 %s24, %s31
      %s37 = ssub.s32 %s23, %s35
      %s38 = sor.u32 %s36, %s37
      %p39 = scmp.eq.s32.totalorder %s38, 0
      %s41 = sadd.s32 %s40, 1
      %s42 = scalar_select %p39, %s40, %s41
      %p45 = pneg %p39
      %p46 = scmp.eq.s32.totalorder %s16, 1
      %p47 = por %p45, %p46
      %p48 = scmp.ne.s32.totalorder %s40, %s43
      %p49 = scmp.eq.s32.totalorder %s16, 0
      %p50 = por %p48, %p49
      %p51 = scmp.ne.s32.totalorder %s40, %s43
      %p52 = scmp.eq.s32.totalorder %s21, 1
      %p53 = por %p51, %p52
      %p54 = scmp.ne.s32.totalorder %s43, %s44
      %p55 = scmp.eq.s32.totalorder %s21, 0
      %p56 = por %p54, %p55
      %p57 = scmp.ne.s32.totalorder %s43, %s44
      %p58 = scmp.eq.s32.totalorder %s22, 1
      %p59 = por %p57, %p58
      %p61 = scmp.ne.s32.totalorder %s44, %s60
      %p62 = scmp.eq.s32.totalorder %s22, 0
      %p63 = por %p61, %p62
      %s65 = sadd.s32 %s64, 1
      %p68 = scmp.eq.s32.totalorder %s16, 1
      %p69 = scmp.ne.s32.totalorder %s64, %s66
      %p70 = scmp.eq.s32.totalorder %s16, 0
      %p71 = por %p69, %p70
      %p72 = scmp.ne.s32.totalorder %s64, %s66
      %p73 = scmp.eq.s32.totalorder %s21, 1
      %p74 = por %p72, %p73
      %p75 = scmp.ne.s32.totalorder %s66, %s67
      %p76 = scmp.eq.s32.totalorder %s21, 0
      %p77 = por %p75, %p76
      %p78 = scmp.ne.s32.totalorder %s66, %s67
      %p79 = scmp.eq.s32.totalorder %s22, 1
      %p80 = por %p78, %p79
      %p82 = scmp.ne.s32.totalorder %s67, %s81
      %p83 = scmp.eq.s32.totalorder %s22, 0
      %p84 = por %p82, %p83
      %s85 = ssub.s32 %s24, %s31
      %s86 = ssub.s32 %s23, %s35
      %s87 = sor.u32 %s85, %s86
      %p88 = scmp.eq.s32.totalorder %s87, 0
      %s90 = sadd.s32 %s89, 1
      %s91 = scalar_select %p88, %s89, %s90
      %p94 = pneg %p88
      %p95 = scmp.eq.s32.totalorder %s16, 1
      %p96 = por %p94, %p95
      %p97 = scmp.ne.s32.totalorder %s89, %s92
      %p98 = scmp.eq.s32.totalorder %s16, 0
      %p99 = por %p97, %p98
      %p100 = scmp.ne.s32.totalorder %s89, %s92
      %p101 = scmp.eq.s32.totalorder %s21, 1
      %p102 = por %p100, %p101
      %p103 = scmp.ne.s32.totalorder %s92, %s93
      %p104 = scmp.eq.s32.totalorder %s21, 0
      %p105 = por %p103, %p104
      %p106 = scmp.ne.s32.totalorder %s92, %s93
      %p107 = scmp.eq.s32.totalorder %s22, 1
      %p108 = por %p106, %p107
      %p110 = scmp.ne.s32.totalorder %s93, %s109
      %p111 = scmp.eq.s32.totalorder %s22, 0
      %p112 = por %p110, %p111
      %s113 = ssub.s32 %s23, %s35
      %p114 = scmp.eq.s32.totalorder %s113, 0
      %s116 = sadd.s32 %s115, 1
      %s117 = scalar_select %p114, %s115, %s116
      %p120 = pneg %p114
      %p121 = scmp.eq.s32.totalorder %s16, 1
      %p122 = por %p120, %p121
      %p123 = scmp.ne.s32.totalorder %s115, %s118
      %p124 = scmp.eq.s32.totalorder %s16, 0
      %p125 = por %p123, %p124
      %p126 = scmp.ne.s32.totalorder %s115, %s118
      %p127 = scmp.eq.s32.totalorder %s21, 1
      %p128 = por %p126, %p127
      %p129 = scmp.ne.s32.totalorder %s118, %s119
      %p130 = scmp.eq.s32.totalorder %s21, 0
      %p131 = por %p129, %p130
      %p132 = scmp.ne.s32.totalorder %s118, %s119
      %p133 = scmp.eq.s32.totalorder %s22, 1
      %p134 = por %p132, %p133
      %p136 = scmp.ne.s32.totalorder %s119, %s135
      %p137 = scmp.eq.s32.totalorder %s22, 0
      %p138 = por %p136, %p137
      %s139 = ssub.s32 %s23, %s35
      %p140 = scmp.eq.s32.totalorder %s139, 0
      %s142 = sadd.s32 %s141, 1
      %s143 = scalar_select %p140, %s141, %s142
      %p146 = pneg %p140
      %p147 = scmp.eq.s32.totalorder %s16, 1
      %p148 = por %p146, %p147
      %p149 = scmp.ne.s32.totalorder %s141, %s144
      %p150 = scmp.eq.s32.totalorder %s16, 0
      %p151 = por %p149, %p150
      %p152 = scmp.ne.s32.totalorder %s141, %s144
      %p153 = scmp.eq.s32.totalorder %s21, 1
      %p154 = por %p152, %p153
      %p155 = scmp.ne.s32.totalorder %s144, %s145
      %p156 = scmp.eq.s32.totalorder %s21, 0
      %p157 = por %p155, %p156
      %p158 = scmp.ne.s32.totalorder %s144, %s145
      %p159 = scmp.eq.s32.totalorder %s22, 1
      %p160 = por %p158, %p159
      %p162 = scmp.ne.s32.totalorder %s145, %s161
      %p163 = scmp.eq.s32.totalorder %s22, 0
      %p164 = por %p162, %p163
      %s165 = ssub.s32 %s23, %s35
      %p166 = scmp.eq.s32.totalorder %s165, 0
      %s168 = sadd.s32 %s167, 1
      %s169 = scalar_select %p166, %s167, %s168
      %p172 = pneg %p166
      %p173 = scmp.eq.s32.totalorder %s16, 1
      %p174 = por %p172, %p173
      %p175 = scmp.ne.s32.totalorder %s167, %s170
      %p176 = scmp.eq.s32.totalorder %s16, 0
      %p177 = por %p175, %p176
      %p178 = scmp.ne.s32.totalorder %s167, %s170
      %p179 = scmp.eq.s32.totalorder %s21, 1
      %p180 = por %p178, %p179
      %p181 = scmp.ne.s32.totalorder %s170, %s171
      %p182 = scmp.eq.s32.totalorder %s21, 0
      %p183 = por %p181, %p182
      %p184 = scmp.ne.s32.totalorder %s170, %s171
      %p185 = scmp.eq.s32.totalorder %s22, 1
      %p186 = por %p184, %p185
      %p188 = scmp.ne.s32.totalorder %s171, %s187
      %p189 = scmp.eq.s32.totalorder %s22, 0
      %p190 = por %p188, %p189
      %s191 = ssub.s32 %s23, %s35
      %p192 = scmp.eq.s32.totalorder %s191, 0
      %s194 = sadd.s32 %s193, 1
      %s195 = scalar_select %p192, %s193, %s194
      %p198 = pneg %p192
      %p199 = scmp.eq.s32.totalorder %s16, 1
      %p200 = por %p198, %p199
      %p201 = scmp.ne.s32.totalorder %s193, %s196
      %p202 = scmp.eq.s32.totalorder %s16, 0
      %p203 = por %p201, %p202
      %p204 = scmp.ne.s32.totalorder %s193, %s196
      %p205 = scmp.eq.s32.totalorder %s21, 1
      %p206 = por %p204, %p205
      %p207 = scmp.ne.s32.totalorder %s196, %s197
      %p208 = scmp.eq.s32.totalorder %s21, 0
      %p209 = por %p207, %p208
      %p210 = scmp.ne.s32.totalorder %s196, %s197
      %p211 = scmp.eq.s32.totalorder %s22, 1
      %p212 = por %p210, %p211
      %p214 = scmp.ne.s32.totalorder %s197, %s213
      %p215 = scmp.eq.s32.totalorder %s22, 0
      %p216 = por %p214, %p215
      %p217 = scmp.le.s32.totalorder 1, %s16
      %p218 = scmp.lt.s32.totalorder %s16, 3
      %p219 = pnand %p217, %p218
      %p220 = pneg %p219
      // Predicated region
      $region9: #{lsnn_layer.1} parent=5 // pred_check
        _
      $region10: #{lsnn_layer.1} parent=5 // pred_check_branch
        %222 = sbr.rel (%p219) target = $region12
      $region11: #{lsnn_layer.1} parent=5 // pred_region
        %s223 = ssub.s32 %s16, 1
        // Predicated region
        $region13: #{lsnn_layer.1} parent=11 // pred_check
          %p224 = pneg %p77
        $region14: #{lsnn_layer.1} parent=11 // pred_check_branch
          %226 = sbr.rel (%p224) target = $region16
        $region15: #{lsnn_layer.1} parent=11 // pred_region
          _
        $region16: #{lsnn_layer.1} parent=11 // pred_fallthru
          _
      $region12: #{lsnn_layer.1} parent=5 // pred_fallthru
        _
      %p227 = scmp.lt.s32.totalorder %s16, 2
      // Predicated region
      $region17: #{lsnn_layer.1} parent=5 // pred_check
        %p228 = pneg %p227
      $region18: #{lsnn_layer.1} parent=5 // pred_check_branch
        %230 = sbr.rel (%p228) target = $region20
      $region19: #{lsnn_layer.1} parent=5 // pred_region
        // Predicated region
        $region21: #{lsnn_layer.1} parent=19 // pred_check
          %p231 = pneg %p50
        $region22: #{lsnn_layer.1} parent=19 // pred_check_branch
          %233 = sbr.rel (%p231) target = $region24
        $region23: #{lsnn_layer.1} parent=19 // pred_region
          %s234 = smul.u32 4, %s24
          %p235 = scmp.lt.s32.totalorder %s234, 7
          %s236 = scalar_select %p235, %s234, 7
          %p237 = scmp.lt.s32.totalorder %s23, 0
          %s238 = scalar_select %p237, %s23, 0
          %s239 = sadd.s32 %s238, %s236
          %s240 = smul.addr %s239, 2
          %s241 = scalar_lea.vmem %s0, %s240
          %s242 = smul.u32 4, %s24
        $region24: #{lsnn_layer.1} parent=19 // pred_fallthru
          _
      $region20: #{lsnn_layer.1} parent=5 // pred_fallthru
        _
      %p243 = scmp.le.s32.totalorder 1, %s16
      %p244 = scmp.lt.s32.totalorder %s16, 3
      %p245 = pnand %p243, %p244
      %p246 = pneg %p245
      // Predicated region
      $region25: #{lsnn_layer.1} parent=5 // pred_check
        _
      $region26: #{lsnn_layer.1} parent=5 // pred_check_branch
        %248 = sbr.rel (%p245) target = $region28
      $region27: #{lsnn_layer.1} parent=5 // pred_region
        %s249 = ssub.s32 %s16, 1
        %s250 = smul.u32 4, %s26
        %p251 = scmp.lt.s32.totalorder %s250, 7
        %s252 = scalar_select %p251, %s250, 7
        %p253 = scmp.lt.s32.totalorder %s25, 0
        %s254 = scalar_select %p253, %s25, 0
        %s255 = sadd.s32 %s254, %s252
        %s256 = smul.addr %s255, 2
        %s257 = scalar_lea.vmem %s0, %s256
        %p258 = pneg %p56
        %p259 = pneg %p53
        %p260 = pneg %p77
        %p261 = pneg %p74
        %p262 = pneg %p105
        %p263 = pneg %p102
        %p264 = scmp.lt.s32.totalorder %s26, 1
        %s265 = scalar_select %p264, %s26, 1
        %p266 = scmp.lt.s32.totalorder %s25, 0
        %s267 = scalar_select %p266, %s25, 0
        %s268 = sadd.s32 %s267, %s265
        %s269 = scalar_lea.vmem %s2, %s268
        %p270 = pneg %p131
        %p271 = pneg %p128
        %p272 = pneg %p157
        %p273 = pneg %p154
        %p274 = pneg %p183
        %p275 = pneg %p180
        %p276 = pneg %p209
        %p277 = pneg %p206
        %s278 = smul.u32 4, %s26
        %p279 = scmp.lt.s32.totalorder %s278, 7
        %s280 = scalar_select %p279, %s278, 7
        %p281 = scmp.lt.s32.totalorder %s25, 0
        %s282 = scalar_select %p281, %s25, 0
        %s283 = sadd.s32 %s282, %s280
        %s284 = smul.addr %s283, 2
        %s285 = scalar_lea.vmem %s0, %s284
        %s286 = smul.u32 4, %s26
        %p287 = scmp.lt.s32.totalorder %s26, 1
        %s288 = scalar_select %p287, %s26, 1
        %p289 = scmp.lt.s32.totalorder %s25, 0
        %s290 = scalar_select %p289, %s25, 0
        %s291 = sadd.s32 %s290, %s288
        %s292 = scalar_lea.vmem %s2, %s291
        %p293 = scmp.eq.s32.totalorder %s26, 0
        // Predicated region
        $region29: #{lsnn_layer.1} parent=27 // pred_check
          %p294 = pneg %p293
        $region30: #{lsnn_layer.1} parent=27 // pred_check_branch
          %296 = sbr.rel (%p294) target = $region32
        $region31: #{lsnn_layer.1} parent=27 // pred_region
          %vm297 = vcmask 254976
          %298 = vst.msk [vmem:[#allocation2] sm:$0x3] %vm297, 0.0
          %299 = vst.msk [vmem:[#allocation4] sm:$0x3] %vm297, 0.0
          %300 = vst.msk [vmem:[#allocation6] sm:$0x3] %vm297, 0.0
          %301 = vst.msk [vmem:[#allocation7] sm:$0x3] %vm297, 0.0
        $region32: #{lsnn_layer.1} parent=27 // pred_fallthru
          _
        %v302 = vld [vmem:[#allocation2] sm:$0x3]
        %v303 = vld [vmem:[#allocation4] sm:$0x3]
        %v304 = vld [vmem:[#allocation6] sm:$0x3]
        %v305 = vld [vmem:[#allocation7] sm:$0x3]
        %v306 = vld [vmem:[%s1] sm:$0xff]
        %v307 = vld [vmem:[%s1 + $0x8] sm:$0xff]
        %v308 = vld [vmem:[%s1 + $0x10] sm:$0xff]
        %v309 = vld [vmem:[%s1 + $0x18] sm:$0xff]
        %v310 = vsub.f32 0.0, %v303
        %v311 = vadd.f32 %v310, %v304
        %v312 = vmul.f32 %v311, 0.1
        %v313 = vadd.f32 %v303, %v312
        %v314 = vmul.f32 %v304, -0.2
        %v315 = vadd.f32 %v304, %v314
        %v316 = vsub.f32 1.0, %v305
        %v317 = vmul.f32 %v316, 1.4285714e-06
        %v318 = vadd.f32 %v305, %v317
        %v319 = vsub.f32 %v313, %v318
        %vm320 = vcmp.gt.f32.partialorder %v319, 0.0
        %v321 = vsel %vm320, 1.0, 0.0
        %v322 = vld [vmem:[%s285] sm:$0x3]
        %v323 = vadd.f32 %v315, %v322
        %vm324 = vcmask 261120
        %v326 = vsel %vm324, %v302, 0
        %328 = vmatprep.subr.mxu0 0.0
        %329 = vmatpush1.msra.mxu0 0.0
        %330 = vmatprep.subr.mxu0 0.0
        %331 = vmatpush1.msra.mxu0 0.0
        %332 = vmatprep.subr.mxu0 0.0
        %333 = vmatpush1.msra.mxu0 0.0
        %334 = vmatprep.subr.mxu0 0.0
        %335 = vmatpush1.msra.mxu0 0.0
        %336 = vmatprep.subr.mxu0 0.0
        %337 = vmatpush1.msra.mxu0 0.0
        %338 = vmatprep.subr.mxu0 0.0
        %339 = vmatpush1.msra.mxu0 0.0
        %340 = vmatprep.subr.mxu0 0.0
        %341 = vmatpush1.msra.mxu0 0.0
        %342 = vmatprep.subr.mxu0 0.0
        %343 = vmatpush1.msra.mxu0 0.0
        %344 = vmatprep.subr.mxu0 0.0
        %345 = vmatpush1.msra.mxu0 0.0
        %346 = vmatprep.subr.mxu0 0.0
        %347 = vmatpush1.msra.mxu0 0.0
        %348 = vmatprep.subr.mxu0 0.0
        %349 = vmatpush1.msra.mxu0 0.0
        %350 = vmatprep.subr.mxu0 0.0
        %351 = vmatpush1.msra.mxu0 0.0
        %352 = vmatprep.subr.mxu0 0.0
        %353 = vmatpush1.msra.mxu0 %v309
        %354 = vmatprep.subr.mxu0 0.0
        %355 = vmatpush1.msra.mxu0 %v308
        %356 = vmatprep.subr.mxu0 0.0
        %357 = vmatpush1.msra.mxu0 %v307
        %358 = vmatprep.subr.mxu0 0.0
        %359 = vmatpush1.msra.mxu0 %v306
        %360 = vmatprep.subr.mxu0 0.0
        %361 = vmatpush2.msra.mxu0 0.0
        %362 = vmatprep.subr.mxu0 0.0
        %363 = vmatpush2.msra.mxu0 0.0
        %364 = vmatprep.subr.mxu0 0.0
        %365 = vmatpush2.msra.mxu0 0.0
        %366 = vmatprep.subr.mxu0 0.0
        %367 = vmatpush2.msra.mxu0 0.0
        %368 = vmatprep.subr.mxu0 0.0
        %369 = vmatpush2.msra.mxu0 0.0
        %370 = vmatprep.subr.mxu0 0.0
        %371 = vmatpush2.msra.mxu0 0.0
        %372 = vmatprep.subr.mxu0 0.0
        %373 = vmatpush2.msra.mxu0 0.0
        %374 = vmatprep.subr.mxu0 0.0
        %375 = vmatpush2.msra.mxu0 0.0
        %376 = vmatprep.subr.mxu0 0.0
        %377 = vmatpush2.msra.mxu0 0.0
        %378 = vmatprep.subr.mxu0 0.0
        %379 = vmatpush2.msra.mxu0 0.0
        %380 = vmatprep.subr.mxu0 0.0
        %381 = vmatpush2.msra.mxu0 0.0
        %382 = vmatprep.subr.mxu0 0.0
        %383 = vmatpush2.msra.mxu0 0.0
        %384 = vmatprep.subr.mxu0 0.0
        %385 = vmatpush2.msra.mxu0 0.0
        %386 = vmatprep.subr.mxu0 0.0
        %387 = vmatpush2.msra.mxu0 0.0
        %388 = vmatprep.subr.mxu0 0.0
        %389 = vmatpush2.msra.mxu0 0.0
        %390 = vmatprep.subr.mxu0 0.0
        %391 = vmatpush2.msra.mxu0 0.0
        %392 = vmatprep.mubr.f32.mxu0 0.0
        %393 = vmatmul.mubr.f32.gmra.mxu0 %v326
        %v394 = vpop.f32.mrf.mxu0
        %v395 = vadd.f32 0.0, %v394
        %v396 = vpop.f32.mrf.mxu0
        %397 = vdwg.mxu0
        %v398 = vadd.f32 %v323, %v395
        %v399 = vsel %vm320, 0.0, %v313
        %v400 = vadd.f32 %v318, 0.0025714287
        %v401 = vsel %vm320, %v400, %v318
        %v402 = vsub.f32 0.0, %v399
        %v403 = vadd.f32 %v402, %v398
        %v404 = vmul.f32 %v403, 0.1
        %v405 = vadd.f32 %v399, %v404
        %v406 = vmul.f32 %v398, -0.2
        %v407 = vadd.f32 %v398, %v406
        %v408 = vsub.f32 1.0, %v401
        %v409 = vmul.f32 %v408, 1.4285714e-06
        %v410 = vadd.f32 %v401, %v409
        %v411 = vsub.f32 %v405, %v410
        %vm412 = vcmp.gt.f32.partialorder %v411, 0.0
        %v413 = vsel %vm412, 1.0, 0.0
        %s414 = scalar_lea.vmem %s285, 2
        %v415 = vld [vmem:[%s414] sm:$0x3]
        %v416 = vadd.f32 %v407, %v415
        %v418 = vsel %vm324, %v321, 0
        %420 = vmatprep.subr.mxu0 0.0
        %421 = vmatpush1.msra.mxu0 0.0
        %422 = vmatprep.subr.mxu0 0.0
        %423 = vmatpush1.msra.mxu0 0.0
        %424 = vmatprep.subr.mxu0 0.0
        %425 = vmatpush1.msra.mxu0 0.0
        %426 = vmatprep.subr.mxu0 0.0
        %427 = vmatpush1.msra.mxu0 0.0
        %428 = vmatprep.subr.mxu0 0.0
        %429 = vmatpush1.msra.mxu0 0.0
        %430 = vmatprep.subr.mxu0 0.0
        %431 = vmatpush1.msra.mxu0 0.0
        %432 = vmatprep.subr.mxu0 0.0
        %433 = vmatpush1.msra.mxu0 0.0
        %434 = vmatprep.subr.mxu0 0.0
        %435 = vmatpush1.msra.mxu0 0.0
        %436 = vmatprep.subr.mxu0 0.0
        %437 = vmatpush1.msra.mxu0 0.0
        %438 = vmatprep.subr.mxu0 0.0
        %439 = vmatpush1.msra.mxu0 0.0
        %440 = vmatprep.subr.mxu0 0.0
        %441 = vmatpush1.msra.mxu0 0.0
        %442 = vmatprep.subr.mxu0 0.0
        %443 = vmatpush1.msra.mxu0 0.0
        %444 = vmatprep.subr.mxu0 0.0
        %445 = vmatpush1.msra.mxu0 %v309
        %446 = vmatprep.subr.mxu0 0.0
        %447 = vmatpush1.msra.mxu0 %v308
        %448 = vmatprep.subr.mxu0 0.0
        %449 = vmatpush1.msra.mxu0 %v307
        %450 = vmatprep.subr.mxu0 0.0
        %451 = vmatpush1.msra.mxu0 %v306
        %452 = vmatprep.subr.mxu0 0.0
        %453 = vmatpush2.msra.mxu0 0.0
        %454 = vmatprep.subr.mxu0 0.0
        %455 = vmatpush2.msra.mxu0 0.0
        %456 = vmatprep.subr.mxu0 0.0
        %457 = vmatpush2.msra.mxu0 0.0
        %458 = vmatprep.subr.mxu0 0.0
        %459 = vmatpush2.msra.mxu0 0.0
        %460 = vmatprep.subr.mxu0 0.0
        %461 = vmatpush2.msra.mxu0 0.0
        %462 = vmatprep.subr.mxu0 0.0
        %463 = vmatpush2.msra.mxu0 0.0
        %464 = vmatprep.subr.mxu0 0.0
        %465 = vmatpush2.msra.mxu0 0.0
        %466 = vmatprep.subr.mxu0 0.0
        %467 = vmatpush2.msra.mxu0 0.0
        %468 = vmatprep.subr.mxu0 0.0
        %469 = vmatpush2.msra.mxu0 0.0
        %470 = vmatprep.subr.mxu0 0.0
        %471 = vmatpush2.msra.mxu0 0.0
        %472 = vmatprep.subr.mxu0 0.0
        %473 = vmatpush2.msra.mxu0 0.0
        %474 = vmatprep.subr.mxu0 0.0
        %475 = vmatpush2.msra.mxu0 0.0
        %476 = vmatprep.subr.mxu0 0.0
        %477 = vmatpush2.msra.mxu0 0.0
        %478 = vmatprep.subr.mxu0 0.0
        %479 = vmatpush2.msra.mxu0 0.0
        %480 = vmatprep.subr.mxu0 0.0
        %481 = vmatpush2.msra.mxu0 0.0
        %482 = vmatprep.subr.mxu0 0.0
        %483 = vmatpush2.msra.mxu0 0.0
        %484 = vmatprep.mubr.f32.mxu0 0.0
        %485 = vmatmul.mubr.f32.gmra.mxu0 %v418
        %v486 = vpop.f32.mrf.mxu0
        %v487 = vadd.f32 0.0, %v486
        %v488 = vpop.f32.mrf.mxu0
        %489 = vdwg.mxu0
        %v490 = vadd.f32 %v416, %v487
        %v491 = vsel %vm412, 0.0, %v405
        %v492 = vadd.f32 %v410, 0.0025714287
        %v493 = vsel %vm412, %v492, %v410
        %v494 = vsub.f32 0.0, %v491
        %v495 = vadd.f32 %v494, %v490
        %v496 = vmul.f32 %v495, 0.1
        %v497 = vadd.f32 %v491, %v496
        %v498 = vmul.f32 %v490, -0.2
        %v499 = vadd.f32 %v490, %v498
        %v500 = vsub.f32 1.0, %v493
        %v501 = vmul.f32 %v500, 1.4285714e-06
        %v502 = vadd.f32 %v493, %v501
        %v503 = vsub.f32 %v497, %v502
        %vm504 = vcmp.gt.f32.partialorder %v503, 0.0
        %v505 = vsel %vm504, 1.0, 0.0
        %s506 = scalar_lea.vmem %s285, 4
        %v507 = vld [vmem:[%s506] sm:$0x3]
        %v508 = vadd.f32 %v499, %v507
        %v510 = vsel %vm324, %v413, 0
        %512 = vmatprep.subr.mxu0 0.0
        %513 = vmatpush1.msra.mxu0 0.0
        %514 = vmatprep.subr.mxu0 0.0
        %515 = vmatpush1.msra.mxu0 0.0
        %516 = vmatprep.subr.mxu0 0.0
        %517 = vmatpush1.msra.mxu0 0.0
        %518 = vmatprep.subr.mxu0 0.0
        %519 = vmatpush1.msra.mxu0 0.0
        %520 = vmatprep.subr.mxu0 0.0
        %521 = vmatpush1.msra.mxu0 0.0
        %522 = vmatprep.subr.mxu0 0.0
        %523 = vmatpush1.msra.mxu0 0.0
        %524 = vmatprep.subr.mxu0 0.0
        %525 = vmatpush1.msra.mxu0 0.0
        %526 = vmatprep.subr.mxu0 0.0
        %527 = vmatpush1.msra.mxu0 0.0
        %528 = vmatprep.subr.mxu0 0.0
        %529 = vmatpush1.msra.mxu0 0.0
        %530 = vmatprep.subr.mxu0 0.0
        %531 = vmatpush1.msra.mxu0 0.0
        %532 = vmatprep.subr.mxu0 0.0
        %533 = vmatpush1.msra.mxu0 0.0
        %534 = vmatprep.subr.mxu0 0.0
        %535 = vmatpush1.msra.mxu0 0.0
        %536 = vmatprep.subr.mxu0 0.0
        %537 = vmatpush1.msra.mxu0 %v309
        %538 = vmatprep.subr.mxu0 0.0
        %539 = vmatpush1.msra.mxu0 %v308
        %540 = vmatprep.subr.mxu0 0.0
        %541 = vmatpush1.msra.mxu0 %v307
        %542 = vmatprep.subr.mxu0 0.0
        %543 = vmatpush1.msra.mxu0 %v306
        %544 = vmatprep.subr.mxu0 0.0
        %545 = vmatpush2.msra.mxu0 0.0
        %546 = vmatprep.subr.mxu0 0.0
        %547 = vmatpush2.msra.mxu0 0.0
        %548 = vmatprep.subr.mxu0 0.0
        %549 = vmatpush2.msra.mxu0 0.0
        %550 = vmatprep.subr.mxu0 0.0
        %551 = vmatpush2.msra.mxu0 0.0
        %552 = vmatprep.subr.mxu0 0.0
        %553 = vmatpush2.msra.mxu0 0.0
        %554 = vmatprep.subr.mxu0 0.0
        %555 = vmatpush2.msra.mxu0 0.0
        %556 = vmatprep.subr.mxu0 0.0
        %557 = vmatpush2.msra.mxu0 0.0
        %558 = vmatprep.subr.mxu0 0.0
        %559 = vmatpush2.msra.mxu0 0.0
        %560 = vmatprep.subr.mxu0 0.0
        %561 = vmatpush2.msra.mxu0 0.0
        %562 = vmatprep.subr.mxu0 0.0
        %563 = vmatpush2.msra.mxu0 0.0
        %564 = vmatprep.subr.mxu0 0.0
        %565 = vmatpush2.msra.mxu0 0.0
        %566 = vmatprep.subr.mxu0 0.0
        %567 = vmatpush2.msra.mxu0 0.0
        %568 = vmatprep.subr.mxu0 0.0
        %569 = vmatpush2.msra.mxu0 0.0
        %570 = vmatprep.subr.mxu0 0.0
        %571 = vmatpush2.msra.mxu0 0.0
        %572 = vmatprep.subr.mxu0 0.0
        %573 = vmatpush2.msra.mxu0 0.0
        %574 = vmatprep.subr.mxu0 0.0
        %575 = vmatpush2.msra.mxu0 0.0
        %576 = vmatprep.mubr.f32.mxu0 0.0
        %577 = vmatmul.mubr.f32.gmra.mxu0 %v510
        %v578 = vpop.f32.mrf.mxu0
        %v579 = vadd.f32 0.0, %v578
        %v580 = vpop.f32.mrf.mxu0
        %581 = vdwg.mxu0
        %v582 = vadd.f32 %v508, %v579
        %v583 = vsel %vm504, 0.0, %v497
        %v584 = vadd.f32 %v502, 0.0025714287
        %v585 = vsel %vm504, %v584, %v502
        %v586 = vsub.f32 0.0, %v583
        %v587 = vadd.f32 %v586, %v582
        %v588 = vmul.f32 %v587, 0.1
        %v589 = vadd.f32 %v583, %v588
        %v590 = vmul.f32 %v582, -0.2
        %v591 = vadd.f32 %v582, %v590
        %v592 = vsub.f32 1.0, %v585
        %v593 = vmul.f32 %v592, 1.4285714e-06
        %v594 = vadd.f32 %v585, %v593
        %v595 = vsub.f32 %v589, %v594
        %vm596 = vcmp.gt.f32.partialorder %v595, 0.0
        %v597 = vsel %vm596, 1.0, 0.0
        %s598 = scalar_lea.vmem %s285, 6
        %v599 = vld [vmem:[%s598] sm:$0x3]
        %v600 = vadd.f32 %v591, %v599
        %v602 = vsel %vm324, %v505, 0
        %604 = vmatprep.subr.mxu0 0.0
        %605 = vmatpush1.msra.mxu0 0.0
        %606 = vmatprep.subr.mxu0 0.0
        %607 = vmatpush1.msra.mxu0 0.0
        %608 = vmatprep.subr.mxu0 0.0
        %609 = vmatpush1.msra.mxu0 0.0
        %610 = vmatprep.subr.mxu0 0.0
        %611 = vmatpush1.msra.mxu0 0.0
        %612 = vmatprep.subr.mxu0 0.0
        %613 = vmatpush1.msra.mxu0 0.0
        %614 = vmatprep.subr.mxu0 0.0
        %615 = vmatpush1.msra.mxu0 0.0
        %616 = vmatprep.subr.mxu0 0.0
        %617 = vmatpush1.msra.mxu0 0.0
        %618 = vmatprep.subr.mxu0 0.0
        %619 = vmatpush1.msra.mxu0 0.0
        %620 = vmatprep.subr.mxu0 0.0
        %621 = vmatpush1.msra.mxu0 0.0
        %622 = vmatprep.subr.mxu0 0.0
        %623 = vmatpush1.msra.mxu0 0.0
        %624 = vmatprep.subr.mxu0 0.0
        %625 = vmatpush1.msra.mxu0 0.0
        %626 = vmatprep.subr.mxu0 0.0
        %627 = vmatpush1.msra.mxu0 0.0
        %628 = vmatprep.subr.mxu0 0.0
        %629 = vmatpush1.msra.mxu0 %v309
        %630 = vmatprep.subr.mxu0 0.0
        %631 = vmatpush1.msra.mxu0 %v308
        %632 = vmatprep.subr.mxu0 0.0
        %633 = vmatpush1.msra.mxu0 %v307
        %634 = vmatprep.subr.mxu0 0.0
        %635 = vmatpush1.msra.mxu0 %v306
        %636 = vmatprep.subr.mxu0 0.0
        %637 = vmatpush2.msra.mxu0 0.0
        %638 = vmatprep.subr.mxu0 0.0
        %639 = vmatpush2.msra.mxu0 0.0
        %640 = vmatprep.subr.mxu0 0.0
        %641 = vmatpush2.msra.mxu0 0.0
        %642 = vmatprep.subr.mxu0 0.0
        %643 = vmatpush2.msra.mxu0 0.0
        %644 = vmatprep.subr.mxu0 0.0
        %645 = vmatpush2.msra.mxu0 0.0
        %646 = vmatprep.subr.mxu0 0.0
        %647 = vmatpush2.msra.mxu0 0.0
        %648 = vmatprep.subr.mxu0 0.0
        %649 = vmatpush2.msra.mxu0 0.0
        %650 = vmatprep.subr.mxu0 0.0
        %651 = vmatpush2.msra.mxu0 0.0
        %652 = vmatprep.subr.mxu0 0.0
        %653 = vmatpush2.msra.mxu0 0.0
        %654 = vmatprep.subr.mxu0 0.0
        %655 = vmatpush2.msra.mxu0 0.0
        %656 = vmatprep.subr.mxu0 0.0
        %657 = vmatpush2.msra.mxu0 0.0
        %658 = vmatprep.subr.mxu0 0.0
        %659 = vmatpush2.msra.mxu0 0.0
        %660 = vmatprep.subr.mxu0 0.0
        %661 = vmatpush2.msra.mxu0 0.0
        %662 = vmatprep.subr.mxu0 0.0
        %663 = vmatpush2.msra.mxu0 0.0
        %664 = vmatprep.subr.mxu0 0.0
        %665 = vmatpush2.msra.mxu0 0.0
        %666 = vmatprep.subr.mxu0 0.0
        %667 = vmatpush2.msra.mxu0 0.0
        %668 = vmatprep.mubr.f32.mxu0 0.0
        %669 = vmatmul.mubr.f32.gmra.mxu0 %v602
        %v670 = vpop.f32.mrf.mxu0
        %v671 = vadd.f32 0.0, %v670
        %v672 = vpop.f32.mrf.mxu0
        %673 = vdwg.mxu0
        %v674 = vadd.f32 %v600, %v671
        %v675 = vsel %vm596, 0.0, %v589
        %v676 = vadd.f32 %v594, 0.0025714287
        %v677 = vsel %vm596, %v676, %v594
        %678 = vrot.lane.b32.xlu0 %v413, 32
        %v679 = vpop.permute.xlu0 %678
        %681 = vrot.lane.b32.xlu0 %v505, 64
        %v682 = vpop.permute.xlu0 %681
        %685 = vrot.lane.b32.xlu0 %v597, 96
        %v686 = vpop.permute.xlu0 %685
        %v688 = vsel %vm324, %v321, %v679
        %vm689 = vcmask 523264
        %v690 = vsel %vm689, %v688, %v682
        %vm691 = vcmask 785408
        %v692 = vsel %vm691, %v690, %v686
        %v693 = vpack.c.bf16 %v692, %v692
        %694 = vst [vmem:[%s292] sm:$0x1] %v693
        %vm695 = vcmask 254976
        %696 = vst.msk [vmem:[#allocation2] sm:$0x3] %vm695, %v597
        %697 = vst.msk [vmem:[#allocation4] sm:$0x3] %vm695, %v675
        %698 = vst.msk [vmem:[#allocation6] sm:$0x3] %vm695, %v674
        %699 = vst.msk [vmem:[#allocation7] sm:$0x3] %vm695, %v677
        %p700 = scmp.lt.s32.totalorder %s26, 1
        %s701 = scalar_select %p700, %s26, 1
        %p702 = scmp.lt.s32.totalorder %s25, 0
        %s703 = scalar_select %p702, %s25, 0
        %s704 = sadd.s32 %s703, %s701
        %s705 = scalar_lea.vmem %s2, %s704
        // Predicated region
        $region33: #{lsnn_layer.1} parent=27 // pred_check
          %p706 = pneg %p102
        $region34: #{lsnn_layer.1} parent=27 // pred_check_branch
          %708 = sbr.rel (%p706) target = $region36
        $region35: #{lsnn_layer.1} parent=27 // pred_region
          _
        $region36: #{lsnn_layer.1} parent=27 // pred_fallthru
          _
        // Predicated region
        $region37: #{lsnn_layer.1} parent=27 // pred_check
          %p709 = pneg %p128
        $region38: #{lsnn_layer.1} parent=27 // pred_check_branch
          %711 = sbr.rel (%p709) target = $region40
        $region39: #{lsnn_layer.1} parent=27 // pred_region
          %s713 = ssub.s32 32, 32
          %714 = vsyncadd [#allocation3], %s713
          %s715 = smul.addr %s25, 32
          %s716 = scalar_lea.hbm %s3, %s715
          %s718 = sshll.u32 [#allocation2], 4
          %s719 = int_to_ptr.vmem [resolvable:$true] %s718
          %721 = dma.vmem_to_hbm [thread:$0]  %s719, 32, %s716, [#allocation3]
        $region40: #{lsnn_layer.1} parent=27 // pred_fallthru
          _
        // Predicated region
        $region41: #{lsnn_layer.1} parent=27 // pred_check
          %p722 = pneg %p154
        $region42: #{lsnn_layer.1} parent=27 // pred_check_branch
          %724 = sbr.rel (%p722) target = $region44
        $region43: #{lsnn_layer.1} parent=27 // pred_region
          %s726 = ssub.s32 32, 32
          %727 = vsyncadd [#allocation5], %s726
          %s728 = smul.addr %s25, 32
          %s729 = scalar_lea.hbm %s4, %s728
          %s731 = sshll.u32 [#allocation4], 4
          %s732 = int_to_ptr.vmem [resolvable:$true] %s731
          %734 = dma.vmem_to_hbm [thread:$0]  %s732, 32, %s729, [#allocation5]
        $region44: #{lsnn_layer.1} parent=27 // pred_fallthru
          _
        // Predicated region
        $region45: #{lsnn_layer.1} parent=27 // pred_check
          %p735 = pneg %p180
        $region46: #{lsnn_layer.1} parent=27 // pred_check_branch
          %737 = sbr.rel (%p735) target = $region48
        $region47: #{lsnn_layer.1} parent=27 // pred_region
          %s739 = ssub.s32 32, 32
          %740 = vsyncadd [#allocation5], %s739
          %s741 = smul.addr %s25, 32
          %s742 = scalar_lea.hbm %s5, %s741
          %s744 = sshll.u32 [#allocation6], 4
          %s745 = int_to_ptr.vmem [resolvable:$true] %s744
          %747 = dma.vmem_to_hbm [thread:$0]  %s745, 32, %s742, [#allocation5]
        $region48: #{lsnn_layer.1} parent=27 // pred_fallthru
          _
        // Predicated region
        $region49: #{lsnn_layer.1} parent=27 // pred_check
          %p748 = pneg %p206
        $region50: #{lsnn_layer.1} parent=27 // pred_check_branch
          %750 = sbr.rel (%p748) target = $region52
        $region51: #{lsnn_layer.1} parent=27 // pred_region
          %s752 = ssub.s32 32, 32
          %753 = vsyncadd [#allocation8], %s752
          %s754 = smul.addr %s25, 32
          %s755 = scalar_lea.hbm %s6, %s754
          %s757 = sshll.u32 [#allocation7], 4
          %s758 = int_to_ptr.vmem [resolvable:$true] %s757
          %760 = dma.vmem_to_hbm [thread:$0]  %s758, 32, %s755, [#allocation8]
        $region52: #{lsnn_layer.1} parent=27 // pred_fallthru
          _
        // Predicated region
        $region53: #{lsnn_layer.1} parent=27 // pred_check
          %p761 = pneg %p128
        $region54: #{lsnn_layer.1} parent=27 // pred_check_branch
          %763 = sbr.rel (%p761) target = $region56
        $region55: #{lsnn_layer.1} parent=27 // pred_region
          %764 = dma.done [#allocation3], 32
        $region56: #{lsnn_layer.1} parent=27 // pred_fallthru
          _
        // Predicated region
        $region57: #{lsnn_layer.1} parent=27 // pred_check
          %p765 = pneg %p154
        $region58: #{lsnn_layer.1} parent=27 // pred_check_branch
          %767 = sbr.rel (%p765) target = $region60
        $region59: #{lsnn_layer.1} parent=27 // pred_region
          %768 = dma.done [#allocation5], 32
        $region60: #{lsnn_layer.1} parent=27 // pred_fallthru
          _
        // Predicated region
        $region61: #{lsnn_layer.1} parent=27 // pred_check
          %p769 = pneg %p180
        $region62: #{lsnn_layer.1} parent=27 // pred_check_branch
          %771 = sbr.rel (%p769) target = $region64
        $region63: #{lsnn_layer.1} parent=27 // pred_region
          %772 = dma.done [#allocation5], 32
        $region64: #{lsnn_layer.1} parent=27 // pred_fallthru
          _
        // Predicated region
        $region65: #{lsnn_layer.1} parent=27 // pred_check
          %p773 = pneg %p206
        $region66: #{lsnn_layer.1} parent=27 // pred_check_branch
          %775 = sbr.rel (%p773) target = $region68
        $region67: #{lsnn_layer.1} parent=27 // pred_region
          %776 = dma.done [#allocation8], 32
        $region68: #{lsnn_layer.1} parent=27 // pred_fallthru
          _
      $region28: #{lsnn_layer.1} parent=5 // pred_fallthru
        _
      %p777 = scmp.le.s32.totalorder 2, %s16
      // Predicated region
      $region69: #{lsnn_layer.1} parent=5 // pred_check
        %p778 = pneg %p777
      $region70: #{lsnn_layer.1} parent=5 // pred_check_branch
        %780 = sbr.rel (%p778) target = $region72
      $region71: #{lsnn_layer.1} parent=5 // pred_region
        %s781 = ssub.s32 %s16, 2
        // Predicated region
        $region73: #{lsnn_layer.1} parent=71 // pred_check
          %p782 = pneg %p108
        $region74: #{lsnn_layer.1} parent=71 // pred_check_branch
          %784 = sbr.rel (%p782) target = $region76
        $region75: #{lsnn_layer.1} parent=71 // pred_region
          %p785 = scmp.lt.s32.totalorder %s28, 1
          %s786 = scalar_select %p785, %s28, 1
          %p787 = scmp.lt.s32.totalorder %s27, 0
          %s788 = scalar_select %p787, %s27, 0
          %s789 = sadd.s32 %s788, %s786
          %s790 = scalar_lea.vmem %s2, %s789
        $region76: #{lsnn_layer.1} parent=71 // pred_fallthru
          _
      $region72: #{lsnn_layer.1} parent=5 // pred_fallthru
        _
    $region6: #{lsnn_layer.1} parent=1 // loop_footer
      %s20 = sadd.s32 1, %s16
    $region7: #{lsnn_layer.1} parent=1 // loop_footer_branch
      %15 = sbr.rel target = $region3
    $region8: #{lsnn_layer.1} parent=1 // loop_exit
      _
    %791 = vsyncpa [#allocation3], 1
    %s792 = scalar_lea.sflag [#allocation3], 1
    %793 = vsyncpa %s792, 1
    %794 = vsyncpa [#allocation5], 1
    %795 = vsyncpa [#allocation8], 1

</llo_original>
